<compile_context>
chip_gen: v7x
topology: tpu7x:2x2x1
jax: 0.10.0
libtpu: 0.0.40
codegen_flags: <defaults>
</compile_context>

<pallas_src>
import math

import jax
import jax.numpy as jnp
from jax import lax
from jax.experimental import pallas as pl
from jax.experimental.pallas import tpu as pltpu


def _round_up(x, m):
    return (x + m - 1) // m * m


# ---------------------------------------------------------------------------
# Kernel 1: fused Q/K/V projection (1x1 convs), written once per batch in bf16.
# ---------------------------------------------------------------------------
def _proj_kernel(x_ref, w_ref, b_ref, out_ref):
    x = x_ref[0].astype(jnp.bfloat16)                       # (C, tp)
    for i in range(3):                                      # 0 = Q, 1 = K, 2 = V
        y = jnp.dot(w_ref[i], x, preferred_element_type=jnp.float32) + b_ref[i]
        out_ref[0, i] = y.astype(jnp.bfloat16)


def _project_qkv(xf, w_qkv, b_qkv, t_p):
    B, C, n_pad = xf.shape
    est = (2 * C * t_p * 4              # x block, double buffered
           + 2 * 3 * C * C * 2          # weights (bf16), double buffered
           + 2 * 3 * C * 4              # biases
           + 2 * 3 * C * t_p * 2        # out block (bf16), double buffered
           + 3 * C * t_p * 4)           # f32 transients
    vmem_limit = int(min(56 << 20, max(16 << 20, est + est // 4)))
    return pl.pallas_call(
        _proj_kernel,
        out_shape=jax.ShapeDtypeStruct((B, 3, C, n_pad), jnp.bfloat16),
        grid_spec=pltpu.PrefetchScalarGridSpec(
            num_scalar_prefetch=0,
            grid=(B, n_pad // t_p),
            in_specs=[
                pl.BlockSpec((1, C, t_p), lambda b, p: (b, 0, p)),     # x tile
                pl.BlockSpec((3, C, C), lambda b, p: (0, 0, 0)),       # W (bf16)
                pl.BlockSpec((3, C, 1), lambda b, p: (0, 0, 0)),       # biases
            ],
            out_specs=pl.BlockSpec((1, 3, C, t_p), lambda b, p: (b, 0, 0, p)),
        ),
        compiler_params=pltpu.CompilerParams(
            dimension_semantics=("parallel", "parallel"),
            vmem_limit_bytes=vmem_limit,
        ),
    )(xf, w_qkv, b_qkv)


# ---------------------------------------------------------------------------
# Kernel 2: flash-style position attention with online softmax.
# ---------------------------------------------------------------------------
def _make_attn_kernel(n_valid, n_pad):
    needs_mask = (n_pad != n_valid)

    def kernel(x_ref, q_ref, k_ref, v_ref, *rest):
        if needs_mask:
            mask_ref, gamma_ref, out_ref, m_scr, l_scr, acc_scr = rest
        else:
            gamma_ref, out_ref, m_scr, l_scr, acc_scr = rest

        ki = pl.program_id(2)
        nk = pl.num_programs(2)

        # ---- init per (batch, query-tile): reset online-softmax stats ----
        @pl.when(ki == 0)
        def _init():
            m_scr[...] = jnp.full_like(m_scr, -jnp.inf)
            l_scr[...] = jnp.zeros_like(l_scr)
            acc_scr[...] = jnp.zeros_like(acc_scr)

        q = q_ref[0, 0]                                     # (C, tq) bf16
        k = k_ref[0, 0]                                     # (C, tk) bf16
        v = v_ref[0, 0]                                     # (C, tk) bf16

        # energy tile s[key, query] = sum_c K[c,key] * Q[c,query] -> (tk, tq)
        # (channel axes contracted: LHS-transposed matmul, MXU-native; the
        #  output matmul below is canonical NN, so no explicit transposes.)
        s = lax.dot_general(k, q,
                            dimension_numbers=(((0,), (0,)), ((), ())),
                            preferred_element_type=jnp.float32)
        if needs_mask:
            s = s + mask_ref[...]                           # (tk, 1): 0 / -1e30

        # ---- online softmax along the key axis (axis 0), f32 math ----
        m_prev = m_scr[...]                                 # (1, tq)
        m_new = jnp.maximum(m_prev, jnp.max(s, axis=0, keepdims=True))
        alpha = jnp.exp(m_prev - m_new)                     # (1, tq)
        p = jnp.exp(s - m_new)                              # (tk, tq)
        l_scr[...] = alpha * l_scr[...] + jnp.sum(p, axis=0, keepdims=True)
        # out contribution: (C, tk) @ (tk, tq) -> (C, tq), canonical MXU matmul
        acc_scr[...] = alpha * acc_scr[...] + jnp.dot(
            v, p.astype(jnp.bfloat16), preferred_element_type=jnp.float32)
        m_scr[...] = m_new

        # ---- finalize: normalize (exact), residual, lane-dense write ----
        @pl.when(ki == nk - 1)
        def _finalize():
            inv_l = pl.reciprocal(l_scr[...], approx=False)  # once per q-tile
            out_ref[0] = gamma_ref[0] * (acc_scr[...] * inv_l) + x_ref[0]

    return kernel


def pam_forward(x, wq, bq, wk, bk, wv, bv, gamma, *, tile_q=512, tile_k=256):
    """PAM forward. x: (B, C, H, W) f32; wq/wk/wv: (C, C); bq/bk/bv: (C,);
    gamma: (1,).  tile_q / tile_k are the query / key position tiles
    (asymmetric, tile_q >> tile_k cuts key-stream re-reads)."""
    B, C, H, W = x.shape
    N = H * W

    n128 = _round_up(N, 128)
    t_q = max(128, min(_round_up(tile_q, 128), n128))
    t_k = max(128, min(_round_up(tile_k, 128), n128))
    n_pad = _round_up(N, math.lcm(t_q, t_k))

    xf = x.reshape(B, C, N).astype(jnp.float32)
    if n_pad != N:
        xf = jnp.pad(xf, ((0, 0), (0, 0), (0, n_pad - N)))

    # Stack the three 1x1-conv weights; projection kernel emits bf16 Q/K/V.
    w_qkv = jnp.stack([wq, wk, wv], axis=0).astype(jnp.bfloat16)           # (3,C,C)
    b_qkv = jnp.stack([bq, bk, bv], axis=0).reshape(3, C, 1).astype(jnp.float32)

    qkv = _project_qkv(xf, w_qkv, b_qkv, t_q)               # (B, 3, C, n_pad) bf16

    nq = n_pad // t_q
    nk = n_pad // t_k
    needs_mask = (n_pad != N)

    in_specs = [
        pl.BlockSpec((1, C, t_q), lambda b, qi, ki: (b, 0, qi)),        # x (resid)
        pl.BlockSpec((1, 1, C, t_q), lambda b, qi, ki: (b, 0, 0, qi)),  # Q tile
        pl.BlockSpec((1, 1, C, t_k), lambda b, qi, ki: (b, 1, 0, ki)),  # K tile
        pl.BlockSpec((1, 1, C, t_k), lambda b, qi, ki: (b, 2, 0, ki)),  # V tile
    ]
    args = [xf, qkv, qkv, qkv]
    if needs_mask:
        pos = jnp.arange(n_pad, dtype=jnp.int32)
        mask = jnp.where(pos < N, 0.0, -1e30).astype(jnp.float32).reshape(n_pad, 1)
        in_specs.append(pl.BlockSpec((t_k, 1), lambda b, qi, ki: (ki, 0)))
        args.append(mask)
    in_specs.append(pl.BlockSpec(memory_space=pltpu.SMEM))              # gamma
    args.append(gamma.astype(jnp.float32))

    # Scoped-VMEM budget derived from the actual (double-buffered) footprint
    # plus ~25% headroom; no unconditional clamp to a fixed window.
    est = (2 * C * t_q * 4        # x residual block, double buffered
           + 2 * C * t_q * 2      # Q bf16, double buffered
           + 2 * 2 * C * t_k * 2  # K and V bf16, double buffered
           + 2 * C * t_q * 4      # out block, double buffered
           + C * t_q * 4          # acc scratch
           + 2 * t_q * 4          # m / l scratch
           + 2 * t_k * t_q * 4    # s / p transients
           + 2 * t_k * 4)         # mask
    vmem_limit = int(min(56 << 20, max(16 << 20, est + est // 4)))

    kernel = _make_attn_kernel(N, n_pad)

    out_flat = pl.pallas_call(
        kernel,
        out_shape=jax.ShapeDtypeStruct((B, C, n_pad), jnp.float32),
        grid_spec=pltpu.PrefetchScalarGridSpec(
            num_scalar_prefetch=0,
            grid=(B, nq, nk),
            in_specs=in_specs,
            out_specs=pl.BlockSpec((1, C, t_q), lambda b, qi, ki: (b, 0, qi)),
            scratch_shapes=[
                pltpu.VMEM((1, t_q), jnp.float32),    # running max m
                pltpu.VMEM((1, t_q), jnp.float32),    # running sum l
                pltpu.VMEM((C, t_q), jnp.float32),    # output accumulator
            ],
        ),
        compiler_params=pltpu.CompilerParams(
            dimension_semantics=("parallel", "parallel", "arbitrary"),
            vmem_limit_bytes=vmem_limit,
        ),
    )(*args)

    return out_flat[:, :, :N].reshape(B, C, H, W)


def pam_reference(x, wq, bq, wk, bk, wv, bv, gamma):
    """Pure-JAX f32 reference mirroring the PyTorch forward."""
    B, C, H, W = x.shape
    N = H * W
    xf = x.reshape(B, C, N)
    q = jnp.einsum('oc,bcn->bon', wq, xf) + bq[None, :, None]
    k = jnp.einsum('oc,bcn->bon', wk, xf) + bk[None, :, None]
    v = jnp.einsum('oc,bcn->bon', wv, xf) + bv[None, :, None]
    energy = jnp.einsum('bcn,bcm->bnm', q, k)           # (B, N, N)
    attn = jax.nn.softmax(energy, axis=-1)
    out = jnp.einsum('bcm,bnm->bcn', v, attn)           # (B, C, N)
    out = gamma[0] * out + xf
    return out.reshape(B, C, H, W)


if __name__ == "__main__":
    key = jax.random.PRNGKey(0)
    B, C, H, W = 2, 4, 16, 16

    (k_x, k_wq, k_bq, k_wk, k_bk, k_wv, k_bv, k_x2, k_x3) = jax.random.split(key, 9)
    x = jax.random.normal(k_x, (B, C, H, W), dtype=jnp.float32)

    # Conv2d(in_dim, in_dim, kernel_size=1) weights -> (C_out, C_in) matrices.
    wq = jax.random.normal(k_wq, (C, C), dtype=jnp.float32) * 0.1
    bq = jax.random.normal(k_bq, (C,), dtype=jnp.float32) * 0.1
    wk = jax.random.normal(k_wk, (C, C), dtype=jnp.float32) * 0.1
    bk = jax.random.normal(k_bk, (C,), dtype=jnp.float32) * 0.1
    wv = jax.random.normal(k_wv, (C, C), dtype=jnp.float32) * 0.1
    bv = jax.random.normal(k_bv, (C,), dtype=jnp.float32) * 0.1
    # Module's __init__ sets gamma = 0 (out == x exactly); use a nonzero value
    # so the attention path is actually exercised.
    gamma = jnp.array([0.5], dtype=jnp.float32)

    # bf16 MXU operands -> compare at loosened tolerance.
    tol = 2e-2

    # Test 1: N = 256, tiles 128/128 -> multi-tile online softmax (grid 2x2x2).
    out = pam_forward(x, wq, bq, wk, bk, wv, bv, gamma, tile_q=128, tile_k=128)
    out = jax.block_until_ready(out)
    ref = pam_reference(x, wq, bq, wk, bk, wv, bv, gamma)
    assert out.shape == (B, C, H, W)
    assert jnp.allclose(out, ref, atol=tol, rtol=tol), "mismatch vs reference (tiled)"

    # Test 2: N = 100 (not a multiple of 128) -> padding + additive-mask path.
    x2 = jax.random.normal(k_x2, (1, C, 10, 10), dtype=jnp.float32)
    out2 = pam_forward(x2, wq, bq, wk, bk, wv, bv, gamma)
    out2 = jax.block_until_ready(out2)
    ref2 = pam_reference(x2, wq, bq, wk, bk, wv, bv, gamma)
    assert out2.shape == (1, C, 10, 10)
    assert jnp.allclose(out2, ref2, atol=tol, rtol=tol), "mismatch vs reference (padded)"

    # Test 3: N = 400, asymmetric tiles (tq=256, tk=128) + padding/mask.
    x3 = jax.random.normal(k_x3, (1, C, 20, 20), dtype=jnp.float32)
    out3 = pam_forward(x3, wq, bq, wk, bk, wv, bv, gamma, tile_q=256, tile_k=128)
    out3 = jax.block_until_ready(out3)
    ref3 = pam_reference(x3, wq, bq, wk, bk, wv, bv, gamma)
    assert out3.shape == (1, C, 20, 20)
    assert jnp.allclose(out3, ref3, atol=tol, rtol=tol), "mismatch vs reference (asym)"

    print("KERNEL_OK")
</pallas_src>

<mosaic_0001>
module attributes {stable_mosaic.version = 11 : i64} {
  func.func @_proj_kernel(%arg0: i32, %arg1: i32, %arg2: memref<1x4x128xf32, #tpu.memory_space<vmem>>, %arg3: memref<3x4x4xbf16, #tpu.memory_space<vmem>>, %arg4: memref<3x4x1xf32, #tpu.memory_space<vmem>>, %arg5: memref<1x3x4x128xbf16, #tpu.memory_space<vmem>>) attributes {dimension_semantics = [#tpu.dimension_semantics<parallel>, #tpu.dimension_semantics<parallel>], iteration_bounds = array<i64: 2, 2>, scalar_prefetch = 0 : i64, scratch_operands = 0 : i64, tpu.core_type = #tpu.core_type<tc>, window_params = [{transform_indices = @transform_0, window_bounds = array<i64: 1, 4, 128>}, {pipeline_mode = #tpu.pipeline_mode<synchronous>, transform_indices = @transform_1, window_bounds = array<i64: 3, 4, 4>}, {pipeline_mode = #tpu.pipeline_mode<synchronous>, transform_indices = @transform_2, window_bounds = array<i64: 3, 4, 1>}, {transform_indices = @transform_3, window_bounds = array<i64: 1, 3, 4, 128>}]} {
    %c0 = arith.constant 0 : index
    %c0_0 = arith.constant 0 : index
    %c0_1 = arith.constant 0 : index
    %0 = vector.load %arg2[%c0, %c0_0, %c0_1] : memref<1x4x128xf32, #tpu.memory_space<vmem>>, vector<1x4x128xf32>
    %1 = vector.shape_cast %0 : vector<1x4x128xf32> to vector<4x128xf32>
    %2 = arith.truncf %1 : vector<4x128xf32> to vector<4x128xbf16>
    %c0_2 = arith.constant 0 : index
    %c0_3 = arith.constant 0 : index
    %c0_4 = arith.constant 0 : index
    %3 = vector.load %arg3[%c0_2, %c0_3, %c0_4] : memref<3x4x4xbf16, #tpu.memory_space<vmem>>, vector<1x4x4xbf16>
    %4 = vector.shape_cast %3 : vector<1x4x4xbf16> to vector<4x4xbf16>
    %cst = arith.constant dense<0.000000e+00> : vector<4x128xf32>
    %5 = tpu.matmul %4, %2, %cst {dimension_numbers = #tpu.dot_dimension_numbers<[1], [0], [0], [1], [0, 0, 1, 1], [], []>} : vector<4x4xbf16>, vector<4x128xbf16>, vector<4x128xf32> -> vector<4x128xf32>
    %c0_5 = arith.constant 0 : index
    %c0_6 = arith.constant 0 : index
    %c0_7 = arith.constant 0 : index
    %6 = vector.load %arg4[%c0_5, %c0_6, %c0_7] : memref<3x4x1xf32, #tpu.memory_space<vmem>>, vector<1x4x1xf32>
    %7 = vector.shape_cast %6 : vector<1x4x1xf32> to vector<4x1xf32>
    %8 = vector.broadcast %7 : vector<4x1xf32> to vector<4x128xf32>
    %9 = arith.addf %5, %8 : vector<4x128xf32>
    %10 = arith.truncf %9 : vector<4x128xf32> to vector<4x128xbf16>
    %c0_8 = arith.constant 0 : index
    %c0_9 = arith.constant 0 : index
    %c0_10 = arith.constant 0 : index
    %c0_11 = arith.constant 0 : index
    %11 = vector.load %arg5[%c0_8, %c0_9, %c0_10, %c0_11] : memref<1x3x4x128xbf16, #tpu.memory_space<vmem>>, vector<1x1x4x128xbf16>
    %12 = vector.shape_cast %11 : vector<1x1x4x128xbf16> to vector<4x128xbf16>
    %13 = vector.shape_cast %10 : vector<4x128xbf16> to vector<1x1x4x128xbf16>
    tpu.vector_store %arg5[%c0_8, %c0_9, %c0_10, %c0_11], %13 {strides = array<i32>} : memref<1x3x4x128xbf16, #tpu.memory_space<vmem>>, vector<1x1x4x128xbf16>,
    %c1 = arith.constant 1 : index
    %c0_12 = arith.constant 0 : index
    %c0_13 = arith.constant 0 : index
    %14 = vector.load %arg3[%c1, %c0_12, %c0_13] : memref<3x4x4xbf16, #tpu.memory_space<vmem>>, vector<1x4x4xbf16>
    %15 = vector.shape_cast %14 : vector<1x4x4xbf16> to vector<4x4xbf16>
    %cst_14 = arith.constant dense<0.000000e+00> : vector<4x128xf32>
    %16 = tpu.matmul %15, %2, %cst_14 {dimension_numbers = #tpu.dot_dimension_numbers<[1], [0], [0], [1], [0, 0, 1, 1], [], []>} : vector<4x4xbf16>, vector<4x128xbf16>, vector<4x128xf32> -> vector<4x128xf32>
    %c1_15 = arith.constant 1 : index
    %c0_16 = arith.constant 0 : index
    %c0_17 = arith.constant 0 : index
    %17 = vector.load %arg4[%c1_15, %c0_16, %c0_17] : memref<3x4x1xf32, #tpu.memory_space<vmem>>, vector<1x4x1xf32>
    %18 = vector.shape_cast %17 : vector<1x4x1xf32> to vector<4x1xf32>
    %19 = vector.broadcast %18 : vector<4x1xf32> to vector<4x128xf32>
    %20 = arith.addf %16, %19 : vector<4x128xf32>
    %21 = arith.truncf %20 : vector<4x128xf32> to vector<4x128xbf16>
    %c0_18 = arith.constant 0 : index
    %c1_19 = arith.constant 1 : index
    %c0_20 = arith.constant 0 : index
    %c0_21 = arith.constant 0 : index
    %22 = vector.load %arg5[%c0_18, %c1_19, %c0_20, %c0_21] : memref<1x3x4x128xbf16, #tpu.memory_space<vmem>>, vector<1x1x4x128xbf16>
    %23 = vector.shape_cast %22 : vector<1x1x4x128xbf16> to vector<4x128xbf16>
    %24 = vector.shape_cast %21 : vector<4x128xbf16> to vector<1x1x4x128xbf16>
    tpu.vector_store %arg5[%c0_18, %c1_19, %c0_20, %c0_21], %24 {strides = array<i32>} : memref<1x3x4x128xbf16, #tpu.memory_space<vmem>>, vector<1x1x4x128xbf16>,
    %c2 = arith.constant 2 : index
    %c0_22 = arith.constant 0 : index
    %c0_23 = arith.constant 0 : index
    %25 = vector.load %arg3[%c2, %c0_22, %c0_23] : memref<3x4x4xbf16, #tpu.memory_space<vmem>>, vector<1x4x4xbf16>
    %26 = vector.shape_cast %25 : vector<1x4x4xbf16> to vector<4x4xbf16>
    %cst_24 = arith.constant dense<0.000000e+00> : vector<4x128xf32>
    %27 = tpu.matmul %26, %2, %cst_24 {dimension_numbers = #tpu.dot_dimension_numbers<[1], [0], [0], [1], [0, 0, 1, 1], [], []>} : vector<4x4xbf16>, vector<4x128xbf16>, vector<4x128xf32> -> vector<4x128xf32>
    %c2_25 = arith.constant 2 : index
    %c0_26 = arith.constant 0 : index
    %c0_27 = arith.constant 0 : index
    %28 = vector.load %arg4[%c2_25, %c0_26, %c0_27] : memref<3x4x1xf32, #tpu.memory_space<vmem>>, vector<1x4x1xf32>
    %29 = vector.shape_cast %28 : vector<1x4x1xf32> to vector<4x1xf32>
    %30 = vector.broadcast %29 : vector<4x1xf32> to vector<4x128xf32>
    %31 = arith.addf %27, %30 : vector<4x128xf32>
    %32 = arith.truncf %31 : vector<4x128xf32> to vector<4x128xbf16>
    %c0_28 = arith.constant 0 : index
    %c2_29 = arith.constant 2 : index
    %c0_30 = arith.constant 0 : index
    %c0_31 = arith.constant 0 : index
    %33 = vector.load %arg5[%c0_28, %c2_29, %c0_30, %c0_31] : memref<1x3x4x128xbf16, #tpu.memory_space<vmem>>, vector<1x1x4x128xbf16>
    %34 = vector.shape_cast %33 : vector<1x1x4x128xbf16> to vector<4x128xbf16>
    %35 = vector.shape_cast %32 : vector<4x128xbf16> to vector<1x1x4x128xbf16>
    tpu.vector_store %arg5[%c0_28, %c2_29, %c0_30, %c0_31], %35 {strides = array<i32>} : memref<1x3x4x128xbf16, #tpu.memory_space<vmem>>, vector<1x1x4x128xbf16>,
    return
  }
  func.func @transform_0(%arg0: i32, %arg1: i32) -> (i32, i32, i32) {
    %c0_i32 = arith.constant 0 : i32
    %c0_i32_0 = arith.constant 0 : i32
    return %arg0, %c0_i32, %arg1 : i32, i32, i32
  }
  func.func @transform_1(%arg0: i32, %arg1: i32) -> (i32, i32, i32) {
    %c0_i32 = arith.constant 0 : i32
    %c0_i32_0 = arith.constant 0 : i32
    %c0_i32_1 = arith.constant 0 : i32
    %c0_i32_2 = arith.constant 0 : i32
    return %c0_i32, %c0_i32_0, %c0_i32_1 : i32, i32, i32
  }
  func.func @transform_2(%arg0: i32, %arg1: i32) -> (i32, i32, i32) {
    %c0_i32 = arith.constant 0 : i32
    %c0_i32_0 = arith.constant 0 : i32
    %c0_i32_1 = arith.constant 0 : i32
    %c0_i32_2 = arith.constant 0 : i32
    return %c0_i32, %c0_i32_0, %c0_i32_1 : i32, i32, i32
  }
  func.func @transform_3(%arg0: i32, %arg1: i32) -> (i32, i32, i32, i32) {
    %c0_i32 = arith.constant 0 : i32
    %c0_i32_0 = arith.constant 0 : i32
    %c0_i32_1 = arith.constant 0 : i32
    return %arg0, %c0_i32, %c0_i32_0, %arg1 : i32, i32, i32, i32
  }
}

</mosaic_0001>

<llo_original>
// kernel: tpu_custom_call.1
$region0: #{tpu_custom_call.1}
  #allocation0 [shape = 'u32[]', space=smem, size = 0x4, offset = 0x4, fixed_abs, tag = 'smem constant byte address 0x4 - core index']
  #allocation1 [shape = 'u32[144,128]{1,0:T(1,128)}', space=vmem, size = 0x12000, scoped, tag = 'internal scratch']
  %s0 = inlined_call_operand.hbm [shape: f32[2,4,256], index: 0, kind: input, shape index: {}]
  %s1 = inlined_call_operand.vmem [shape: bf16[3,4,4], index: 1, kind: input, shape index: {}]
  %s2 = inlined_call_operand.vmem [shape: f32[3,4,1], index: 2, kind: input, shape index: {}]
  %s3 = inlined_call_operand.hbm [shape: bf16[2,3,4,256], index: 3, kind: output, shape index: {}]
  %s4 = sld [smem:[#allocation0]]
  $region49: #{tpu_custom_call.1} parent=0
    _
  %s6 = ssub.s32 1, %s4
  %s7 = scalar_select 0, %s6, %s4
  $region1: #{tpu_custom_call.1} parent=0
    #allocation2 [shape = 'u8[4096]{0}', space=vmem, size = 0x1000, scoped, tag = 'input window, operand 0']
    #allocation3 [shape = 's32[2]{0}', space=sflag, size = 0x8, scoped, tag = 'scoped memory for tpu_custom_call.1']
    #allocation4 [shape = 's32[2]{0}', space=sflag, size = 0x8, scoped, tag = 'scoped memory for tpu_custom_call.1']
    #allocation5 [shape = 'u8[6144]{0}', space=vmem, size = 0x1800, scoped, tag = 'output window, operand 0']
    %8 = vsyncpa [#allocation3], 0
    %s9 = scalar_lea.sflag [#allocation3], 1
    %10 = vsyncpa %s9, 0
    %11 = vsyncpa [#allocation4], 0
    %s12 = scalar_lea.sflag [#allocation4], 1
    %13 = vsyncpa %s12, 0
    loop: start=0, step=1, limit=6
    $region2: #{tpu_custom_call.1} parent=1 // loop_pre_header
      _
    $region3: #{tpu_custom_call.1} parent=1 // loop_header
      %s15 = sphi 0, %s19
      %p16 = scmp.ge.s32.totalorder %s15, 6
      %s22 = sphi 0, %s34
      %s23 = sphi 0, %s30
      %s24 = sphi 0, %s22
      %s25 = sphi 0, %s23
      %s26 = sphi 0, %s24
      %s27 = sphi 0, %s25
      %s39 = sphi 0, %s41
      %s42 = sphi 0, %s39
      %s43 = sphi 0, %s42
      %s59 = sphi 0, %s43
      %s63 = sphi 0, %s63
      %s65 = sphi 0, %s63
      %s66 = sphi 0, %s65
      %s80 = sphi 0, %s66
      %s84 = sphi 0, %s84
      %s86 = sphi 0, %s84
      %s87 = sphi 0, %s86
      %s101 = sphi 0, %s87
      %s109 = sphi 0, %s111
      %s112 = sphi 0, %s109
      %s113 = sphi 0, %s112
      %s129 = sphi 0, %s113
    $region4: #{tpu_custom_call.1} parent=1 // loop_header_branch
      %18 = sbr.rel (%p16) target = $region8
    $region5: #{tpu_custom_call.1} parent=1 // loop_body
      %s20 = ssub.s32 %s15, 1
      %s21 = ssub.s32 %s15, 2
      %s28 = sadd.s32 1, %s23
      %p29 = scmp.ge.s32.totalorder %s28, 2
      %s30 = scalar_select %p29, 0, %s28
      %s31 = sadd.s32 1, %s22
      %s32 = scalar_select %p29, %s31, %s22
      %p33 = scmp.ge.s32.totalorder %s32, 2
      %s34 = scalar_select %p33, 0, %s32
      %s35 = ssub.s32 %s22, %s34
      %s36 = ssub.s32 %s23, %s30
      %s37 = sor.u32 %s35, %s36
      %p38 = scmp.eq.s32.totalorder %s37, 0
      %s40 = sadd.s32 %s39, 1
      %s41 = scalar_select %p38, %s39, %s40
      %p44 = pneg %p38
      %p45 = scmp.eq.s32.totalorder %s15, 3
      %p46 = por %p44, %p45
      %p47 = scmp.ne.s32.totalorder %s39, %s42
      %p48 = scmp.eq.s32.totalorder %s15, 0
      %p49 = por %p47, %p48
      %p50 = scmp.ne.s32.totalorder %s39, %s42
      %p51 = scmp.eq.s32.totalorder %s20, 3
      %p52 = por %p50, %p51
      %p53 = scmp.ne.s32.totalorder %s42, %s43
      %p54 = scmp.eq.s32.totalorder %s20, 0
      %p55 = por %p53, %p54
      %p56 = scmp.ne.s32.totalorder %s42, %s43
      %p57 = scmp.eq.s32.totalorder %s21, 3
      %p58 = por %p56, %p57
      %p60 = scmp.ne.s32.totalorder %s43, %s59
      %p61 = scmp.eq.s32.totalorder %s21, 0
      %p62 = por %p60, %p61
      %s64 = sadd.s32 %s63, 1
      %p67 = scmp.eq.s32.totalorder %s15, 3
      %p68 = scmp.ne.s32.totalorder %s63, %s65
      %p69 = scmp.eq.s32.totalorder %s15, 0
      %p70 = por %p68, %p69
      %p71 = scmp.ne.s32.totalorder %s63, %s65
      %p72 = scmp.eq.s32.totalorder %s20, 3
      %p73 = por %p71, %p72
      %p74 = scmp.ne.s32.totalorder %s65, %s66
      %p75 = scmp.eq.s32.totalorder %s20, 0
      %p76 = por %p74, %p75
      %p77 = scmp.ne.s32.totalorder %s65, %s66
      %p78 = scmp.eq.s32.totalorder %s21, 3
      %p79 = por %p77, %p78
      %p81 = scmp.ne.s32.totalorder %s66, %s80
      %p82 = scmp.eq.s32.totalorder %s21, 0
      %p83 = por %p81, %p82
      %s85 = sadd.s32 %s84, 1
      %p88 = scmp.eq.s32.totalorder %s15, 3
      %p89 = scmp.ne.s32.totalorder %s84, %s86
      %p90 = scmp.eq.s32.totalorder %s15, 0
      %p91 = por %p89, %p90
      %p92 = scmp.ne.s32.totalorder %s84, %s86
      %p93 = scmp.eq.s32.totalorder %s20, 3
      %p94 = por %p92, %p93
      %p95 = scmp.ne.s32.totalorder %s86, %s87
      %p96 = scmp.eq.s32.totalorder %s20, 0
      %p97 = por %p95, %p96
      %p98 = scmp.ne.s32.totalorder %s86, %s87
      %p99 = scmp.eq.s32.totalorder %s21, 3
      %p100 = por %p98, %p99
      %p102 = scmp.ne.s32.totalorder %s87, %s101
      %p103 = scmp.eq.s32.totalorder %s21, 0
      %p104 = por %p102, %p103
      %s105 = ssub.s32 %s22, %s34
      %s106 = ssub.s32 %s23, %s30
      %s107 = sor.u32 %s105, %s106
      %p108 = scmp.eq.s32.totalorder %s107, 0
      %s110 = sadd.s32 %s109, 1
      %s111 = scalar_select %p108, %s109, %s110
      %p114 = pneg %p108
      %p115 = scmp.eq.s32.totalorder %s15, 3
      %p116 = por %p114, %p115
      %p117 = scmp.ne.s32.totalorder %s109, %s112
      %p118 = scmp.eq.s32.totalorder %s15, 0
      %p119 = por %p117, %p118
      %p120 = scmp.ne.s32.totalorder %s109, %s112
      %p121 = scmp.eq.s32.totalorder %s20, 3
      %p122 = por %p120, %p121
      %p123 = scmp.ne.s32.totalorder %s112, %s113
      %p124 = scmp.eq.s32.totalorder %s20, 0
      %p125 = por %p123, %p124
      %p126 = scmp.ne.s32.totalorder %s112, %s113
      %p127 = scmp.eq.s32.totalorder %s21, 3
      %p128 = por %p126, %p127
      %p130 = scmp.ne.s32.totalorder %s113, %s129
      %p131 = scmp.eq.s32.totalorder %s21, 0
      %p132 = por %p130, %p131
      %p133 = scmp.le.s32.totalorder 1, %s15
      %p134 = scmp.lt.s32.totalorder %s15, 5
      %p135 = pnand %p133, %p134
      %p136 = pneg %p135
      // Predicated region
      $region9: #{tpu_custom_call.1} parent=5 // pred_check
        _
      $region10: #{tpu_custom_call.1} parent=5 // pred_check_branch
        %138 = sbr.rel (%p135) target = $region12
      $region11: #{tpu_custom_call.1} parent=5 // pred_region
        %s139 = ssub.s32 %s15, 1
        // Predicated region
        $region13: #{tpu_custom_call.1} parent=11 // pred_check
          %p140 = pneg %p76
        $region14: #{tpu_custom_call.1} parent=11 // pred_check_branch
          %142 = sbr.rel (%p140) target = $region16
        $region15: #{tpu_custom_call.1} parent=11 // pred_region
          _
        $region16: #{tpu_custom_call.1} parent=11 // pred_fallthru
          _
        // Predicated region
        $region17: #{tpu_custom_call.1} parent=11 // pred_check
          %p143 = pneg %p97
        $region18: #{tpu_custom_call.1} parent=11 // pred_check_branch
          %145 = sbr.rel (%p143) target = $region20
        $region19: #{tpu_custom_call.1} parent=11 // pred_region
          _
        $region20: #{tpu_custom_call.1} parent=11 // pred_fallthru
          _
      $region12: #{tpu_custom_call.1} parent=5 // pred_fallthru
        _
      %p146 = scmp.lt.s32.totalorder %s15, 4
      // Predicated region
      $region21: #{tpu_custom_call.1} parent=5 // pred_check
        %p147 = pneg %p146
      $region22: #{tpu_custom_call.1} parent=5 // pred_check_branch
        %149 = sbr.rel (%p147) target = $region24
      $region23: #{tpu_custom_call.1} parent=5 // pred_region
        // Predicated region
        $region25: #{tpu_custom_call.1} parent=23 // pred_check
          %p150 = pneg %p49
        $region26: #{tpu_custom_call.1} parent=23 // pred_check_branch
          %152 = sbr.rel (%p150) target = $region28
        $region27: #{tpu_custom_call.1} parent=23 // pred_region
          %s153 = sand.u32 %s39, 1
          %s154 = scalar_lea.sflag [#allocation3], %s153
          %s155 = sand.u32 %s39, 1
          %s156 = smul.addr %s155, 4
          %s157 = scalar_lea.vmem [#allocation2], %s156
          %s159 = ssub.s32 64, 64
          %160 = vsyncadd %s154, %s159
          %s161 = smul.addr %s22, 2
          %s162 = sadd.s32 %s23, %s161
          %s163 = smul.addr %s162, 64
          %s164 = scalar_lea.hbm %s0, %s163
          %s166 = sshll.u32 %s157, 4
          %s167 = int_to_ptr.vmem [resolvable:$true] %s166
          %169 = dma.hbm_to_vmem [thread:$0]  %s164, 64, %s167, %s154
        $region28: #{tpu_custom_call.1} parent=23 // pred_fallthru
          _
      $region24: #{tpu_custom_call.1} parent=5 // pred_fallthru
        _
      %p170 = scmp.le.s32.totalorder 1, %s15
      %p171 = scmp.lt.s32.totalorder %s15, 5
      %p172 = pnand %p170, %p171
      %p173 = pneg %p172
      // Predicated region
      $region29: #{tpu_custom_call.1} parent=5 // pred_check
        _
      $region30: #{tpu_custom_call.1} parent=5 // pred_check_branch
        %175 = sbr.rel (%p172) target = $region32
      $region31: #{tpu_custom_call.1} parent=5 // pred_region
        %s176 = ssub.s32 %s15, 1
        %s177 = sand.u32 %s42, 1
        %s178 = scalar_lea.sflag [#allocation3], %s177
        %s179 = sand.u32 %s42, 1
        %s180 = smul.addr %s179, 4
        %s181 = scalar_lea.vmem [#allocation2], %s180
        // Predicated region
        $region33: #{tpu_custom_call.1} parent=31 // pred_check
          %p182 = pneg %p55
        $region34: #{tpu_custom_call.1} parent=31 // pred_check_branch
          %184 = sbr.rel (%p182) target = $region36
        $region35: #{tpu_custom_call.1} parent=31 // pred_region
          %185 = dma.done %s178, 64
        $region36: #{tpu_custom_call.1} parent=31 // pred_fallthru
          _
        %s186 = sand.u32 %s42, 1
        %s187 = scalar_lea.sflag [#allocation3], %s186
        %s188 = sand.u32 %s42, 1
        %s189 = smul.addr %s188, 4
        %s190 = scalar_lea.vmem [#allocation2], %s189
        %p191 = pneg %p55
        %p192 = pneg %p52
        %p193 = pneg %p76
        %p194 = pneg %p73
        %p195 = pneg %p97
        %p196 = pneg %p94
        %p197 = pneg %p125
        %p198 = pneg %p122
        %s199 = sand.u32 %s112, 1
        %s200 = scalar_lea.sflag [#allocation4], %s199
        %s201 = sand.u32 %s112, 1
        %s202 = smul.addr %s201, 6
        %s203 = scalar_lea.vmem [#allocation5], %s202
        %v205 = vld [vmem:[%s181] sm:$0xf]
        %v206 = vpack.c.bf16 %v205, %v205
        %v207 = vld [vmem:[%s1] sm:$0x3]
        %v208 = vld [vmem:[%s2] sm:$0xf]
        %210 = vset.pattern.permute.xlu0 0
        %211 = vperm.xlu0 %210, %v208
        %v212 = vpop.permute.xlu0 %211
        %vm214 = vcmask 31744
        %v216 = vsel %vm214, %v207, 0
        %vm218 = vcmask 1041408
        %v220 = vsel %vm218, %v206, 0
        %222 = vmatprep.subr.bf16.mxu0 0
        %223 = vmatpush1.bf16.msra.mxu0 %v220
        %224 = vmatprep.subr.bf16.mxu0 0
        %225 = vmatpush1.bf16.msra.mxu0 0
        %226 = vmatprep.subr.bf16.mxu0 0
        %227 = vmatpush1.bf16.msra.mxu0 0
        %228 = vmatprep.subr.bf16.mxu0 0
        %229 = vmatpush1.bf16.msra.mxu0 0
        %230 = vmatprep.subr.bf16.mxu0 0
        %231 = vmatpush1.bf16.msra.mxu0 0
        %232 = vmatprep.subr.bf16.mxu0 0
        %233 = vmatpush1.bf16.msra.mxu0 0
        %234 = vmatprep.subr.bf16.mxu0 0
        %235 = vmatpush1.bf16.msra.mxu0 0
        %236 = vmatprep.subr.bf16.mxu0 0
        %237 = vmatpush1.bf16.msra.mxu0 0
        %238 = vmatprep.subr.bf16.mxu0 0
        %239 = vmatpush1.bf16.msra.mxu0 0
        %240 = vmatprep.subr.bf16.mxu0 0
        %241 = vmatpush1.bf16.msra.mxu0 0
        %242 = vmatprep.subr.bf16.mxu0 0
        %243 = vmatpush1.bf16.msra.mxu0 0
        %244 = vmatprep.subr.bf16.mxu0 0
        %245 = vmatpush1.bf16.msra.mxu0 0
        %246 = vmatprep.subr.bf16.mxu0 0
        %247 = vmatpush1.bf16.msra.mxu0 0
        %248 = vmatprep.subr.bf16.mxu0 0
        %249 = vmatpush1.bf16.msra.mxu0 0
        %250 = vmatprep.subr.bf16.mxu0 0
        %251 = vmatpush1.bf16.msra.mxu0 0
        %252 = vmatprep.subr.bf16.mxu0 0
        %253 = vmatpush1.bf16.msra.mxu0 0
        %254 = vmatprep.mubr.bf16.mxu0 0
        %255 = vmatmul.mubr.bf16.gmra.mrb[0].mxu0 %v216
        %v256 = vpop.f32.mrb[0].mxu0
        %v257 = vadd.f32 %v212, %v256
        %v258 = vpop.f32.mrb[0].mxu0
        %v259 = vpop.f32.mrb[0].mxu0
        %v260 = vpop.f32.mrb[0].mxu0
        %261 = vdwg.mxu0
        %v262 = vpack.c.bf16 %v257, %v257
        %263 = vst [vmem:[%s203] sm:$0x3] %v262
        %s264 = scalar_lea.vmem %s1, 2
        %v265 = vld [vmem:[%s264] sm:$0x3]
        %s266 = scalar_lea.vmem %s2, 4
        %v267 = vld [vmem:[%s266] sm:$0xf]
        %269 = vset.pattern.permute.xlu0 0
        %270 = vperm.xlu0 %269, %v267
        %v271 = vpop.permute.xlu0 %270
        %v274 = vsel %vm214, %v265, 0
        %276 = vmatprep.subr.bf16.mxu0 0
        %277 = vmatpush1.bf16.msra.mxu0 %v220
        %278 = vmatprep.subr.bf16.mxu0 0
        %279 = vmatpush1.bf16.msra.mxu0 0
        %280 = vmatprep.subr.bf16.mxu0 0
        %281 = vmatpush1.bf16.msra.mxu0 0
        %282 = vmatprep.subr.bf16.mxu0 0
        %283 = vmatpush1.bf16.msra.mxu0 0
        %284 = vmatprep.subr.bf16.mxu0 0
        %285 = vmatpush1.bf16.msra.mxu0 0
        %286 = vmatprep.subr.bf16.mxu0 0
        %287 = vmatpush1.bf16.msra.mxu0 0
        %288 = vmatprep.subr.bf16.mxu0 0
        %289 = vmatpush1.bf16.msra.mxu0 0
        %290 = vmatprep.subr.bf16.mxu0 0
        %291 = vmatpush1.bf16.msra.mxu0 0
        %292 = vmatprep.subr.bf16.mxu0 0
        %293 = vmatpush1.bf16.msra.mxu0 0
        %294 = vmatprep.subr.bf16.mxu0 0
        %295 = vmatpush1.bf16.msra.mxu0 0
        %296 = vmatprep.subr.bf16.mxu0 0
        %297 = vmatpush1.bf16.msra.mxu0 0
        %298 = vmatprep.subr.bf16.mxu0 0
        %299 = vmatpush1.bf16.msra.mxu0 0
        %300 = vmatprep.subr.bf16.mxu0 0
        %301 = vmatpush1.bf16.msra.mxu0 0
        %302 = vmatprep.subr.bf16.mxu0 0
        %303 = vmatpush1.bf16.msra.mxu0 0
        %304 = vmatprep.subr.bf16.mxu0 0
        %305 = vmatpush1.bf16.msra.mxu0 0
        %306 = vmatprep.subr.bf16.mxu0 0
        %307 = vmatpush1.bf16.msra.mxu0 0
        %308 = vmatprep.mubr.bf16.mxu0 0
        %309 = vmatmul.mubr.bf16.gmra.mrb[0].mxu0 %v274
        %v310 = vpop.f32.mrb[0].mxu0
        %v311 = vadd.f32 %v271, %v310
        %v312 = vpop.f32.mrb[0].mxu0
        %v313 = vpop.f32.mrb[0].mxu0
        %v314 = vpop.f32.mrb[0].mxu0
        %315 = vdwg.mxu0
        %v316 = vpack.c.bf16 %v311, %v311
        %s317 = scalar_lea.vmem %s203, 2 [#allocation5]
        %318 = vst [vmem:[%s317] sm:$0x3] %v316
        %s319 = scalar_lea.vmem %s1, 4
        %v320 = vld [vmem:[%s319] sm:$0x3]
        %s321 = scalar_lea.vmem %s2, 8
        %v322 = vld [vmem:[%s321] sm:$0xf]
        %324 = vset.pattern.permute.xlu0 0
        %325 = vperm.xlu0 %324, %v322
        %v326 = vpop.permute.xlu0 %325
        %v329 = vsel %vm214, %v320, 0
        %331 = vmatprep.subr.bf16.mxu0 0
        %332 = vmatpush1.bf16.msra.mxu0 %v220
        %333 = vmatprep.subr.bf16.mxu0 0
        %334 = vmatpush1.bf16.msra.mxu0 0
        %335 = vmatprep.subr.bf16.mxu0 0
        %336 = vmatpush1.bf16.msra.mxu0 0
        %337 = vmatprep.subr.bf16.mxu0 0
        %338 = vmatpush1.bf16.msra.mxu0 0
        %339 = vmatprep.subr.bf16.mxu0 0
        %340 = vmatpush1.bf16.msra.mxu0 0
        %341 = vmatprep.subr.bf16.mxu0 0
        %342 = vmatpush1.bf16.msra.mxu0 0
        %343 = vmatprep.subr.bf16.mxu0 0
        %344 = vmatpush1.bf16.msra.mxu0 0
        %345 = vmatprep.subr.bf16.mxu0 0
        %346 = vmatpush1.bf16.msra.mxu0 0
        %347 = vmatprep.subr.bf16.mxu0 0
        %348 = vmatpush1.bf16.msra.mxu0 0
        %349 = vmatprep.subr.bf16.mxu0 0
        %350 = vmatpush1.bf16.msra.mxu0 0
        %351 = vmatprep.subr.bf16.mxu0 0
        %352 = vmatpush1.bf16.msra.mxu0 0
        %353 = vmatprep.subr.bf16.mxu0 0
        %354 = vmatpush1.bf16.msra.mxu0 0
        %355 = vmatprep.subr.bf16.mxu0 0
        %356 = vmatpush1.bf16.msra.mxu0 0
        %357 = vmatprep.subr.bf16.mxu0 0
        %358 = vmatpush1.bf16.msra.mxu0 0
        %359 = vmatprep.subr.bf16.mxu0 0
        %360 = vmatpush1.bf16.msra.mxu0 0
        %361 = vmatprep.subr.bf16.mxu0 0
        %362 = vmatpush1.bf16.msra.mxu0 0
        %363 = vmatprep.mubr.bf16.mxu0 0
        %364 = vmatmul.mubr.bf16.gmra.mrb[0].mxu0 %v329
        %v365 = vpop.f32.mrb[0].mxu0
        %v366 = vadd.f32 %v326, %v365
        %v367 = vpop.f32.mrb[0].mxu0
        %v368 = vpop.f32.mrb[0].mxu0
        %v369 = vpop.f32.mrb[0].mxu0
        %370 = vdwg.mxu0
        %v371 = vpack.c.bf16 %v366, %v366
        %s372 = scalar_lea.vmem %s203, 4 [#allocation5]
        %373 = vst [vmem:[%s372] sm:$0x3] %v371
        %s374 = sand.u32 %s112, 1
        %s375 = scalar_lea.sflag [#allocation4], %s374
        %s376 = sand.u32 %s112, 1
        %s377 = smul.addr %s376, 6
        %s378 = scalar_lea.vmem [#allocation5], %s377
        // Predicated region
        $region37: #{tpu_custom_call.1} parent=31 // pred_check
          %p379 = pneg %p122
        $region38: #{tpu_custom_call.1} parent=31 // pred_check_branch
          %381 = sbr.rel (%p379) target = $region40
        $region39: #{tpu_custom_call.1} parent=31 // pred_region
          %s383 = ssub.s32 96, 96
          %384 = vsyncadd %s375, %s383
          %s385 = smul.addr %s24, 6
          %s386 = sadd.s32 %s25, %s385
          %s387 = smul.addr %s386, 32
          %s388 = scalar_lea.hbm %s3, %s387
          %s389 = sshll.u32 %s378, 4
          %s390 = int_to_ptr.vmem [resolvable:$true] %s389
          %395 = dma.vmem_to_hbm [thread:$0]  %s390, 96, %s388, %s375, 32, 64, 2
        $region40: #{tpu_custom_call.1} parent=31 // pred_fallthru
          _
      $region32: #{tpu_custom_call.1} parent=5 // pred_fallthru
        _
      %p396 = scmp.le.s32.totalorder 2, %s15
      // Predicated region
      $region41: #{tpu_custom_call.1} parent=5 // pred_check
        %p397 = pneg %p396
      $region42: #{tpu_custom_call.1} parent=5 // pred_check_branch
        %399 = sbr.rel (%p397) target = $region44
      $region43: #{tpu_custom_call.1} parent=5 // pred_region
        %s400 = ssub.s32 %s15, 2
        // Predicated region
        $region45: #{tpu_custom_call.1} parent=43 // pred_check
          %p401 = pneg %p128
        $region46: #{tpu_custom_call.1} parent=43 // pred_check_branch
          %403 = sbr.rel (%p401) target = $region48
        $region47: #{tpu_custom_call.1} parent=43 // pred_region
          %s404 = sand.u32 %s113, 1
          %s405 = scalar_lea.sflag [#allocation4], %s404
          %s406 = sand.u32 %s113, 1
          %s407 = smul.addr %s406, 6
          %s408 = scalar_lea.vmem [#allocation5], %s407
          %409 = dma.done %s405, 96
        $region48: #{tpu_custom_call.1} parent=43 // pred_fallthru
          _
      $region44: #{tpu_custom_call.1} parent=5 // pred_fallthru
        _
    $region6: #{tpu_custom_call.1} parent=1 // loop_footer
      %s19 = sadd.s32 1, %s15
    $region7: #{tpu_custom_call.1} parent=1 // loop_footer_branch
      %14 = sbr.rel target = $region3
    $region8: #{tpu_custom_call.1} parent=1 // loop_exit
      _
    %410 = vsyncpa [#allocation3], 1
    %s411 = scalar_lea.sflag [#allocation3], 1
    %412 = vsyncpa %s411, 1
    %413 = vsyncpa [#allocation4], 1
    %s414 = scalar_lea.sflag [#allocation4], 1
    %415 = vsyncpa %s414, 1

</llo_original>
